<compile_context>
chip_gen: v7x
topology: tpu7x:2x2x1
jax: 0.10.0
libtpu: 0.0.40
codegen_flags: <defaults>
</compile_context>

<pallas_src>
import functools

import jax
import jax.numpy as jnp
from jax.experimental import pallas as pl
from jax.experimental.pallas import tpu as pltpu


def prodfks_kernel(x_ref, c_ref, o_ref):
    """x_ref: (d, tile_n); c_ref: (H, 4*d), cols per dim = [k0, k2, 1/(k1-k0), 1/(k2-k1)];
    o_ref: (H, tile_n)."""
    d = x_ref.shape[0]
    prod = None
    for i in range(d):  # d is small & static -> unrolled Python loop
        xi = x_ref[i : i + 1, :]  # (1, tile_n); sublane broadcast fused into the subtracts
        # (further micro-opt: stride-0 sublane-broadcast load x_ref[pl.ds(i, H, stride=0), :])
        k0 = c_ref[:, 4 * i + 0 : 4 * i + 1]  # (H, 1)
        k2 = c_ref[:, 4 * i + 1 : 4 * i + 2]
        cu = c_ref[:, 4 * i + 2 : 4 * i + 3]
        cd = c_ref[:, 4 * i + 3 : 4 * i + 4]
        # hat = max(0, min(up-ramp, down-ramp))  -- algebraically identical to the relu-sum form
        phi = jnp.maximum(jnp.minimum(cu * (xi - k0), cd * (k2 - xi)), 0.0)
        prod = phi if prod is None else prod * phi  # running product: fewer live temporaries
    o_ref[...] = prod


@functools.partial(jax.jit, static_argnames=("tile_n", "lane_major_output"))
def prodfks_forward(x, knots, *, tile_n=16384, lane_major_output=False):
    """x: (N, d) float; knots: (d, num_hat, 3) unsorted free knots.
    Returns (N, num_hat), or (num_hat, N) if lane_major_output=True (skips a full HBM pass)."""
    n, d = x.shape
    num_hat = knots.shape[1]
    hat_pad = pl.cdiv(num_hat, 8) * 8  # sublane-aligned hat count

    # ---- hat-coefficient prep (same math as FreeKnotHat.forward); tiny, stays in JAX ----
    k = jnp.sort(knots.astype(jnp.float32), axis=2)  # (d, num_hat, 3)
    k0, k1, k2 = k[..., 0], k[..., 1], k[..., 2]
    coef = jnp.stack([k0, k2, 1.0 / (k1 - k0), 1.0 / (k2 - k1)], axis=2)  # (d, H0, 4)
    if hat_pad != num_hat:
        # benign padding rows (k0=0, k2=1, unit slopes): finite everywhere, sliced off below
        pad = jnp.broadcast_to(
            jnp.array([0.0, 1.0, 1.0, 1.0], jnp.float32), (d, hat_pad - num_hat, 4)
        )
        coef = jnp.concatenate([coef, pad], axis=1)
    # single resident operand, column index = i*4 + {k0, k2, c_up, c_dn}
    coef = jnp.transpose(coef, (1, 0, 2)).reshape(hat_pad, 4 * d)  # (hat_pad, 4*d)

    # ---- tile sizing: big lane-aligned tiles; only clamp down for small N ----
    n_cap = pl.cdiv(max(n, 1), 128) * 128
    tile = max(128, min((int(tile_n) // 128) * 128, n_cap))
    n_pad = pl.cdiv(n, tile) * tile

    # lane-dense input layout (d, n_pad); transpose/pad/astype fuse under jit
    x_t = jnp.pad(x.astype(jnp.float32).T, ((0, 0), (0, n_pad - n)))

    out_t = pl.pallas_call(
        prodfks_kernel,
        out_shape=jax.ShapeDtypeStruct((hat_pad, n_pad), jnp.float32),
        grid_spec=pltpu.PrefetchScalarGridSpec(
            num_scalar_prefetch=0,
            grid=(n_pad // tile,),
            in_specs=[
                pl.BlockSpec((d, tile), lambda t: (0, t)),          # x, lane-dense
                pl.BlockSpec((hat_pad, 4 * d), lambda t: (0, 0)),   # packed coeffs, resident
            ],
            out_specs=pl.BlockSpec((hat_pad, tile), lambda t: (0, t)),
        ),
        compiler_params=pltpu.CompilerParams(dimension_semantics=("parallel",)),
    )(x_t, coef)

    out_t = out_t[:num_hat, :n]
    # num_hat < 128 => do NOT emit (N, H) blocks in-kernel (8-lane masked stores); the optional
    # transpose-free path simply returns the lane-major (num_hat, N) result.
    return out_t if lane_major_output else out_t.T


def prodfks_reference(x, knots):
    """Plain-JAX reference mirroring the PyTorch forward exactly (relu-sum + grouped conv1d)."""
    k = jnp.sort(knots.astype(jnp.float32), axis=2)  # (d, H, 3)
    c1 = 1.0 / (k[:, :, 1] - k[:, :, 0])
    c2 = 1.0 / (k[:, :, 1] - k[:, :, 2]) - 1.0 / (k[:, :, 1] - k[:, :, 0])
    c3 = -(c1 + c2)
    w = jnp.stack([c1, c2, c3], axis=2)                     # (d, H, 3)
    y = jnp.maximum(x[:, :, None, None] - k[None], 0.0)     # (N, d, H, 3)
    s = jnp.sum(y * w[None], axis=-1)                       # (N, d, H)
    return jnp.prod(jnp.maximum(s, 0.0), axis=1)            # (N, H)


if __name__ == "__main__":
    key = jax.random.PRNGKey(0)
    kx, kk, kx1, kk1, kx2 = jax.random.split(key, 5)

    def make_knots(k, d, num_hat):
        # well-separated knot triples (gap >= 0.05) so the reference's relu-sum cancellation
        # stays well-conditioned; stored in unsorted order to exercise the in-wrapper sort.
        kc, kw = jax.random.split(k)
        c = jax.random.uniform(kc, (d, num_hat, 1), jnp.float32, minval=0.3, maxval=0.7)
        w = jax.random.uniform(kw, (d, num_hat, 2), jnp.float32, minval=0.05, maxval=0.25)
        kn = jnp.concatenate([c - w[..., :1], c, c + w[..., 1:]], axis=-1)
        return kn[..., ::-1]

    # ---- generalized case: product of per-dimension FreeKnotHat features ----
    d, num_hat, a, b = 4, 8, 0.0, 1.0
    num_sample = 1000  # not a multiple of 128 -> exercises the padding path
    x = jax.random.uniform(kx, (num_sample, d), jnp.float32, minval=a, maxval=b)
    knots = make_knots(kk, d, num_hat)
    out = jax.block_until_ready(prodfks_forward(x, knots))
    ref = prodfks_reference(x, knots)
    assert out.shape == (num_sample, num_hat)
    assert jnp.allclose(out, ref, atol=1e-4, rtol=1e-4), float(jnp.max(jnp.abs(out - ref)))

    # ---- multi-step grid with ragged tail (N=4097, tile_n=1024 -> 5 grid steps) ----
    x2 = jax.random.uniform(kx2, (4097, d), jnp.float32, minval=a, maxval=b)
    out2 = jax.block_until_ready(prodfks_forward(x2, knots, tile_n=1024))
    ref2 = prodfks_reference(x2, knots)
    assert out2.shape == (4097, num_hat)
    assert jnp.allclose(out2, ref2, atol=1e-4, rtol=1e-4), float(jnp.max(jnp.abs(out2 - ref2)))

    # ---- d == 1 is exactly FreeKnotHat.forward: x (N, 1) -> (N, num_hat) ----
    x1 = jax.random.uniform(kx1, (512, 1), jnp.float32, minval=a, maxval=b)
    knots1 = make_knots(kk1, 1, num_hat)
    out1 = jax.block_until_ready(prodfks_forward(x1, knots1))
    ref1 = prodfks_reference(x1, knots1)
    assert out1.shape == (512, num_hat)
    assert jnp.allclose(out1, ref1, atol=1e-4, rtol=1e-4)

    # ---- lane-major output path (skips the final transpose HBM pass) ----
    out_lm = jax.block_until_ready(prodfks_forward(x, knots, lane_major_output=True))
    assert out_lm.shape == (num_hat, num_sample)
    assert jnp.allclose(out_lm.T, ref, atol=1e-4, rtol=1e-4)

    print("KERNEL_OK")
</pallas_src>

<mosaic_0001>
module attributes {stable_mosaic.version = 11 : i64} {
  func.func @prodfks_kernel(%arg0: i32, %arg1: memref<4x1024xf32, #tpu.memory_space<vmem>>, %arg2: memref<8x16xf32, #tpu.memory_space<vmem>>, %arg3: memref<8x1024xf32, #tpu.memory_space<vmem>>) attributes {dimension_semantics = [#tpu.dimension_semantics<parallel>], iteration_bounds = array<i64: 1>, scalar_prefetch = 0 : i64, scratch_operands = 0 : i64, tpu.core_type = #tpu.core_type<tc>, window_params = [{transform_indices = @transform_0, window_bounds = array<i64: 4, 1024>}, {pipeline_mode = #tpu.pipeline_mode<synchronous>, transform_indices = @transform_1, window_bounds = array<i64: 8, 16>}, {transform_indices = @transform_2, window_bounds = array<i64: 8, 1024>}]} {
    %c0 = arith.constant 0 : index
    %c0_0 = arith.constant 0 : index
    %0 = vector.load %arg1[%c0, %c0_0] : memref<4x1024xf32, #tpu.memory_space<vmem>>, vector<1x1024xf32>
    %c0_1 = arith.constant 0 : index
    %c0_2 = arith.constant 0 : index
    %1 = vector.load %arg2[%c0_1, %c0_2] : memref<8x16xf32, #tpu.memory_space<vmem>>, vector<8x1xf32>
    %c0_3 = arith.constant 0 : index
    %c1 = arith.constant 1 : index
    %2 = vector.load %arg2[%c0_3, %c1] : memref<8x16xf32, #tpu.memory_space<vmem>>, vector<8x1xf32>
    %c0_4 = arith.constant 0 : index
    %c2 = arith.constant 2 : index
    %3 = vector.load %arg2[%c0_4, %c2] : memref<8x16xf32, #tpu.memory_space<vmem>>, vector<8x1xf32>
    %c0_5 = arith.constant 0 : index
    %c3 = arith.constant 3 : index
    %4 = vector.load %arg2[%c0_5, %c3] : memref<8x16xf32, #tpu.memory_space<vmem>>, vector<8x1xf32>
    %5 = vector.broadcast %0 : vector<1x1024xf32> to vector<8x1024xf32>
    %6 = vector.broadcast %1 : vector<8x1xf32> to vector<8x1024xf32>
    %7 = arith.subf %5, %6 : vector<8x1024xf32>
    %8 = vector.broadcast %3 : vector<8x1xf32> to vector<8x1024xf32>
    %9 = arith.mulf %8, %7 : vector<8x1024xf32>
    %10 = vector.broadcast %2 : vector<8x1xf32> to vector<8x1024xf32>
    %11 = vector.broadcast %0 : vector<1x1024xf32> to vector<8x1024xf32>
    %12 = arith.subf %10, %11 : vector<8x1024xf32>
    %13 = vector.broadcast %4 : vector<8x1xf32> to vector<8x1024xf32>
    %14 = arith.mulf %13, %12 : vector<8x1024xf32>
    %15 = arith.minimumf %9, %14 : vector<8x1024xf32>
    %cst = arith.constant 0.000000e+00 : f32
    %16 = vector.broadcast %cst : f32 to vector<8x1024xf32>
    %17 = arith.maximumf %15, %16 : vector<8x1024xf32>
    %c1_6 = arith.constant 1 : index
    %c0_7 = arith.constant 0 : index
    %18 = vector.load %arg1[%c1_6, %c0_7] : memref<4x1024xf32, #tpu.memory_space<vmem>>, vector<1x1024xf32>
    %c0_8 = arith.constant 0 : index
    %c4 = arith.constant 4 : index
    %19 = vector.load %arg2[%c0_8, %c4] : memref<8x16xf32, #tpu.memory_space<vmem>>, vector<8x1xf32>
    %c0_9 = arith.constant 0 : index
    %c5 = arith.constant 5 : index
    %20 = vector.load %arg2[%c0_9, %c5] : memref<8x16xf32, #tpu.memory_space<vmem>>, vector<8x1xf32>
    %c0_10 = arith.constant 0 : index
    %c6 = arith.constant 6 : index
    %21 = vector.load %arg2[%c0_10, %c6] : memref<8x16xf32, #tpu.memory_space<vmem>>, vector<8x1xf32>
    %c0_11 = arith.constant 0 : index
    %c7 = arith.constant 7 : index
    %22 = vector.load %arg2[%c0_11, %c7] : memref<8x16xf32, #tpu.memory_space<vmem>>, vector<8x1xf32>
    %23 = vector.broadcast %18 : vector<1x1024xf32> to vector<8x1024xf32>
    %24 = vector.broadcast %19 : vector<8x1xf32> to vector<8x1024xf32>
    %25 = arith.subf %23, %24 : vector<8x1024xf32>
    %26 = vector.broadcast %21 : vector<8x1xf32> to vector<8x1024xf32>
    %27 = arith.mulf %26, %25 : vector<8x1024xf32>
    %28 = vector.broadcast %20 : vector<8x1xf32> to vector<8x1024xf32>
    %29 = vector.broadcast %18 : vector<1x1024xf32> to vector<8x1024xf32>
    %30 = arith.subf %28, %29 : vector<8x1024xf32>
    %31 = vector.broadcast %22 : vector<8x1xf32> to vector<8x1024xf32>
    %32 = arith.mulf %31, %30 : vector<8x1024xf32>
    %33 = arith.minimumf %27, %32 : vector<8x1024xf32>
    %cst_12 = arith.constant 0.000000e+00 : f32
    %34 = vector.broadcast %cst_12 : f32 to vector<8x1024xf32>
    %35 = arith.maximumf %33, %34 : vector<8x1024xf32>
    %36 = arith.mulf %17, %35 : vector<8x1024xf32>
    %c2_13 = arith.constant 2 : index
    %c0_14 = arith.constant 0 : index
    %37 = vector.load %arg1[%c2_13, %c0_14] : memref<4x1024xf32, #tpu.memory_space<vmem>>, vector<1x1024xf32>
    %c0_15 = arith.constant 0 : index
    %c8 = arith.constant 8 : index
    %38 = vector.load %arg2[%c0_15, %c8] : memref<8x16xf32, #tpu.memory_space<vmem>>, vector<8x1xf32>
    %c0_16 = arith.constant 0 : index
    %c9 = arith.constant 9 : index
    %39 = vector.load %arg2[%c0_16, %c9] : memref<8x16xf32, #tpu.memory_space<vmem>>, vector<8x1xf32>
    %c0_17 = arith.constant 0 : index
    %c10 = arith.constant 10 : index
    %40 = vector.load %arg2[%c0_17, %c10] : memref<8x16xf32, #tpu.memory_space<vmem>>, vector<8x1xf32>
    %c0_18 = arith.constant 0 : index
    %c11 = arith.constant 11 : index
    %41 = vector.load %arg2[%c0_18, %c11] : memref<8x16xf32, #tpu.memory_space<vmem>>, vector<8x1xf32>
    %42 = vector.broadcast %37 : vector<1x1024xf32> to vector<8x1024xf32>
    %43 = vector.broadcast %38 : vector<8x1xf32> to vector<8x1024xf32>
    %44 = arith.subf %42, %43 : vector<8x1024xf32>
    %45 = vector.broadcast %40 : vector<8x1xf32> to vector<8x1024xf32>
    %46 = arith.mulf %45, %44 : vector<8x1024xf32>
    %47 = vector.broadcast %39 : vector<8x1xf32> to vector<8x1024xf32>
    %48 = vector.broadcast %37 : vector<1x1024xf32> to vector<8x1024xf32>
    %49 = arith.subf %47, %48 : vector<8x1024xf32>
    %50 = vector.broadcast %41 : vector<8x1xf32> to vector<8x1024xf32>
    %51 = arith.mulf %50, %49 : vector<8x1024xf32>
    %52 = arith.minimumf %46, %51 : vector<8x1024xf32>
    %cst_19 = arith.constant 0.000000e+00 : f32
    %53 = vector.broadcast %cst_19 : f32 to vector<8x1024xf32>
    %54 = arith.maximumf %52, %53 : vector<8x1024xf32>
    %55 = arith.mulf %36, %54 : vector<8x1024xf32>
    %c3_20 = arith.constant 3 : index
    %c0_21 = arith.constant 0 : index
    %56 = vector.load %arg1[%c3_20, %c0_21] : memref<4x1024xf32, #tpu.memory_space<vmem>>, vector<1x1024xf32>
    %c0_22 = arith.constant 0 : index
    %c12 = arith.constant 12 : index
    %57 = vector.load %arg2[%c0_22, %c12] : memref<8x16xf32, #tpu.memory_space<vmem>>, vector<8x1xf32>
    %c0_23 = arith.constant 0 : index
    %c13 = arith.constant 13 : index
    %58 = vector.load %arg2[%c0_23, %c13] : memref<8x16xf32, #tpu.memory_space<vmem>>, vector<8x1xf32>
    %c0_24 = arith.constant 0 : index
    %c14 = arith.constant 14 : index
    %59 = vector.load %arg2[%c0_24, %c14] : memref<8x16xf32, #tpu.memory_space<vmem>>, vector<8x1xf32>
    %c0_25 = arith.constant 0 : index
    %c15 = arith.constant 15 : index
    %60 = vector.load %arg2[%c0_25, %c15] : memref<8x16xf32, #tpu.memory_space<vmem>>, vector<8x1xf32>
    %61 = vector.broadcast %56 : vector<1x1024xf32> to vector<8x1024xf32>
    %62 = vector.broadcast %57 : vector<8x1xf32> to vector<8x1024xf32>
    %63 = arith.subf %61, %62 : vector<8x1024xf32>
    %64 = vector.broadcast %59 : vector<8x1xf32> to vector<8x1024xf32>
    %65 = arith.mulf %64, %63 : vector<8x1024xf32>
    %66 = vector.broadcast %58 : vector<8x1xf32> to vector<8x1024xf32>
    %67 = vector.broadcast %56 : vector<1x1024xf32> to vector<8x1024xf32>
    %68 = arith.subf %66, %67 : vector<8x1024xf32>
    %69 = vector.broadcast %60 : vector<8x1xf32> to vector<8x1024xf32>
    %70 = arith.mulf %69, %68 : vector<8x1024xf32>
    %71 = arith.minimumf %65, %70 : vector<8x1024xf32>
    %cst_26 = arith.constant 0.000000e+00 : f32
    %72 = vector.broadcast %cst_26 : f32 to vector<8x1024xf32>
    %73 = arith.maximumf %71, %72 : vector<8x1024xf32>
    %74 = arith.mulf %55, %73 : vector<8x1024xf32>
    %c0_27 = arith.constant 0 : index
    %c0_28 = arith.constant 0 : index
    %75 = vector.load %arg3[%c0_27, %c0_28] : memref<8x1024xf32, #tpu.memory_space<vmem>>, vector<8x1024xf32>
    tpu.vector_store %arg3[%c0_27, %c0_28], %74 {strides = array<i32>} : memref<8x1024xf32, #tpu.memory_space<vmem>>, vector<8x1024xf32>,
    return
  }
  func.func @transform_0(%arg0: i32) -> (i32, i32) {
    %c0_i32 = arith.constant 0 : i32
    %c0_i32_0 = arith.constant 0 : i32
    return %c0_i32, %arg0 : i32, i32
  }
  func.func @transform_1(%arg0: i32) -> (i32, i32) {
    %c0_i32 = arith.constant 0 : i32
    %c0_i32_0 = arith.constant 0 : i32
    %c0_i32_1 = arith.constant 0 : i32
    return %c0_i32, %c0_i32_0 : i32, i32
  }
  func.func @transform_2(%arg0: i32) -> (i32, i32) {
    %c0_i32 = arith.constant 0 : i32
    %c0_i32_0 = arith.constant 0 : i32
    return %c0_i32, %arg0 : i32, i32
  }
}

</mosaic_0001>

<llo_original>
// kernel: prodfks_forward.1
$region0: #{prodfks_forward.1}
  #allocation0 [shape = 'u32[]', space=smem, size = 0x4, offset = 0x4, fixed_abs, tag = 'smem constant byte address 0x4 - core index']
  #allocation1 [shape = 'u32[144,128]{1,0:T(1,128)}', space=vmem, size = 0x12000, scoped, tag = 'internal scratch']
  %s0 = inlined_call_operand.vmem [shape: f32[4,1024], index: 0, kind: input, shape index: {}]
  %s1 = inlined_call_operand.vmem [shape: f32[8,16], index: 1, kind: input, shape index: {}]
  %s2 = inlined_call_operand.vmem [shape: f32[8,1024], index: 2, kind: output, shape index: {}]
  %s3 = sld [smem:[#allocation0]]
  $region18: #{prodfks_forward.1} parent=0
    _
  %s5 = ssub.s32 1, %s3
  %s6 = scalar_select 0, %s5, %s3
  // Predicated region
  $region2: #{prodfks_forward.1} parent=0 // pred_check
    _
  $region3: #{prodfks_forward.1} parent=0 // pred_check_branch
    %8 = sbr.rel (0) target = $region5
  $region4: #{prodfks_forward.1} parent=0 // pred_region
    _
  $region5: #{prodfks_forward.1} parent=0 // pred_fallthru
    _
  // Predicated region
  $region6: #{prodfks_forward.1} parent=0 // pred_check
    _
  $region7: #{prodfks_forward.1} parent=0 // pred_check_branch
    %10 = sbr.rel (0) target = $region9
  $region8: #{prodfks_forward.1} parent=0 // pred_region
    _
  $region9: #{prodfks_forward.1} parent=0 // pred_fallthru
    _
  %v11 = vld [vmem:[%s0] ss:$4 sm:$0xff]
  %v12 = vld [vmem:[%s1] sm:$0xff]
  %v14 = vlaneseq
  %v15 = vshrl.u32 %v14, 7
  %v16 = vsub.s32 0, %v15
  %v17 = vrot.slane %v11, %v16
  %v18 = vlaneseq
  %v19 = vshrl.u32 %v18, 7
  %v20 = vsub.s32 1, %v19
  %v21 = vrot.slane %v11, %v20
  %v22 = vlaneseq
  %v23 = vshrl.u32 %v22, 7
  %v24 = vsub.s32 2, %v23
  %v25 = vrot.slane %v11, %v24
  %v26 = vlaneseq
  %v27 = vshrl.u32 %v26, 7
  %v28 = vsub.s32 3, %v27
  %v29 = vrot.slane %v11, %v28
  %v30 = vlaneseq
  %v31 = vshrl.u32 %v30, 7
  %v32 = vsub.s32 4, %v31
  %v33 = vrot.slane %v11, %v32
  %v34 = vlaneseq
  %v35 = vshrl.u32 %v34, 7
  %v36 = vsub.s32 5, %v35
  %v37 = vrot.slane %v11, %v36
  %v38 = vlaneseq
  %v39 = vshrl.u32 %v38, 7
  %v40 = vsub.s32 6, %v39
  %v41 = vrot.slane %v11, %v40
  %v42 = vlaneseq
  %v43 = vshrl.u32 %v42, 7
  %v44 = vsub.s32 7, %v43
  %v45 = vrot.slane %v11, %v44
  %55 = vset.pattern.permute.xlu0 0
  %56 = vperm.xlu0 %55, %v12
  %v57 = vpop.permute.xlu0 %56
  %v59 = vsub.f32 %v17, %v57
  %v60 = vsub.f32 %v21, %v57
  %v61 = vsub.f32 %v25, %v57
  %v62 = vsub.f32 %v29, %v57
  %v63 = vsub.f32 %v33, %v57
  %v64 = vsub.f32 %v37, %v57
  %v65 = vsub.f32 %v41, %v57
  %v66 = vsub.f32 %v45, %v57
  %67 = vset.pattern.permute.xlu0 2
  %68 = vperm.xlu0 %67, %v12
  %v69 = vpop.permute.xlu0 %68
  %v71 = vmul.f32 %v69, %v59
  %v72 = vmul.f32 %v69, %v60
  %v73 = vmul.f32 %v69, %v61
  %v74 = vmul.f32 %v69, %v62
  %v75 = vmul.f32 %v69, %v63
  %v76 = vmul.f32 %v69, %v64
  %v77 = vmul.f32 %v69, %v65
  %v78 = vmul.f32 %v69, %v66
  %79 = vset.pattern.permute.xlu0 1
  %80 = vperm.xlu0 %79, %v12
  %v81 = vpop.permute.xlu0 %80
  %v83 = vsub.f32 %v81, %v17
  %v84 = vsub.f32 %v81, %v21
  %v85 = vsub.f32 %v81, %v25
  %v86 = vsub.f32 %v81, %v29
  %v87 = vsub.f32 %v81, %v33
  %v88 = vsub.f32 %v81, %v37
  %v89 = vsub.f32 %v81, %v41
  %v90 = vsub.f32 %v81, %v45
  %91 = vset.pattern.permute.xlu0 3
  %92 = vperm.xlu0 %91, %v12
  %v93 = vpop.permute.xlu0 %92
  %v95 = vmul.f32 %v93, %v83
  %v96 = vmul.f32 %v93, %v84
  %v97 = vmul.f32 %v93, %v85
  %v98 = vmul.f32 %v93, %v86
  %v99 = vmul.f32 %v93, %v87
  %v100 = vmul.f32 %v93, %v88
  %v101 = vmul.f32 %v93, %v89
  %v102 = vmul.f32 %v93, %v90
  %v103 = vmin.f32 %v71, %v95
  %v104 = vmin.f32 %v72, %v96
  %v105 = vmin.f32 %v73, %v97
  %v106 = vmin.f32 %v74, %v98
  %v107 = vmin.f32 %v75, %v99
  %v108 = vmin.f32 %v76, %v100
  %v109 = vmin.f32 %v77, %v101
  %v110 = vmin.f32 %v78, %v102
  %v111 = vmax.f32 %v103, 0.0
  %v112 = vmax.f32 %v104, 0.0
  %v113 = vmax.f32 %v105, 0.0
  %v114 = vmax.f32 %v106, 0.0
  %v115 = vmax.f32 %v107, 0.0
  %v116 = vmax.f32 %v108, 0.0
  %v117 = vmax.f32 %v109, 0.0
  %v118 = vmax.f32 %v110, 0.0
  %s119 = scalar_lea.vmem %s0, 1
  %v120 = vld [vmem:[%s119] ss:$4 sm:$0xff]
  %v122 = vlaneseq
  %v123 = vshrl.u32 %v122, 7
  %v124 = vsub.s32 0, %v123
  %v125 = vrot.slane %v120, %v124
  %v126 = vlaneseq
  %v127 = vshrl.u32 %v126, 7
  %v128 = vsub.s32 1, %v127
  %v129 = vrot.slane %v120, %v128
  %v130 = vlaneseq
  %v131 = vshrl.u32 %v130, 7
  %v132 = vsub.s32 2, %v131
  %v133 = vrot.slane %v120, %v132
  %v134 = vlaneseq
  %v135 = vshrl.u32 %v134, 7
  %v136 = vsub.s32 3, %v135
  %v137 = vrot.slane %v120, %v136
  %v138 = vlaneseq
  %v139 = vshrl.u32 %v138, 7
  %v140 = vsub.s32 4, %v139
  %v141 = vrot.slane %v120, %v140
  %v142 = vlaneseq
  %v143 = vshrl.u32 %v142, 7
  %v144 = vsub.s32 5, %v143
  %v145 = vrot.slane %v120, %v144
  %v146 = vlaneseq
  %v147 = vshrl.u32 %v146, 7
  %v148 = vsub.s32 6, %v147
  %v149 = vrot.slane %v120, %v148
  %v150 = vlaneseq
  %v151 = vshrl.u32 %v150, 7
  %v152 = vsub.s32 7, %v151
  %v153 = vrot.slane %v120, %v152
  %162 = vset.pattern.permute.xlu0 4
  %163 = vperm.xlu0 %162, %v12
  %v164 = vpop.permute.xlu0 %163
  %v166 = vsub.f32 %v125, %v164
  %v167 = vsub.f32 %v129, %v164
  %v168 = vsub.f32 %v133, %v164
  %v169 = vsub.f32 %v137, %v164
  %v170 = vsub.f32 %v141, %v164
  %v171 = vsub.f32 %v145, %v164
  %v172 = vsub.f32 %v149, %v164
  %v173 = vsub.f32 %v153, %v164
  %174 = vset.pattern.permute.xlu0 6
  %175 = vperm.xlu0 %174, %v12
  %v176 = vpop.permute.xlu0 %175
  %v178 = vmul.f32 %v176, %v166
  %v179 = vmul.f32 %v176, %v167
  %v180 = vmul.f32 %v176, %v168
  %v181 = vmul.f32 %v176, %v169
  %v182 = vmul.f32 %v176, %v170
  %v183 = vmul.f32 %v176, %v171
  %v184 = vmul.f32 %v176, %v172
  %v185 = vmul.f32 %v176, %v173
  %186 = vset.pattern.permute.xlu0 5
  %187 = vperm.xlu0 %186, %v12
  %v188 = vpop.permute.xlu0 %187
  %v190 = vsub.f32 %v188, %v125
  %v191 = vsub.f32 %v188, %v129
  %v192 = vsub.f32 %v188, %v133
  %v193 = vsub.f32 %v188, %v137
  %v194 = vsub.f32 %v188, %v141
  %v195 = vsub.f32 %v188, %v145
  %v196 = vsub.f32 %v188, %v149
  %v197 = vsub.f32 %v188, %v153
  %198 = vset.pattern.permute.xlu0 7
  %199 = vperm.xlu0 %198, %v12
  %v200 = vpop.permute.xlu0 %199
  %v202 = vmul.f32 %v200, %v190
  %v203 = vmul.f32 %v200, %v191
  %v204 = vmul.f32 %v200, %v192
  %v205 = vmul.f32 %v200, %v193
  %v206 = vmul.f32 %v200, %v194
  %v207 = vmul.f32 %v200, %v195
  %v208 = vmul.f32 %v200, %v196
  %v209 = vmul.f32 %v200, %v197
  %v210 = vmin.f32 %v178, %v202
  %v211 = vmin.f32 %v179, %v203
  %v212 = vmin.f32 %v180, %v204
  %v213 = vmin.f32 %v181, %v205
  %v214 = vmin.f32 %v182, %v206
  %v215 = vmin.f32 %v183, %v207
  %v216 = vmin.f32 %v184, %v208
  %v217 = vmin.f32 %v185, %v209
  %v218 = vmax.f32 %v210, 0.0
  %v219 = vmax.f32 %v211, 0.0
  %v220 = vmax.f32 %v212, 0.0
  %v221 = vmax.f32 %v213, 0.0
  %v222 = vmax.f32 %v214, 0.0
  %v223 = vmax.f32 %v215, 0.0
  %v224 = vmax.f32 %v216, 0.0
  %v225 = vmax.f32 %v217, 0.0
  %v226 = vmul.f32 %v111, %v218
  %v227 = vmul.f32 %v112, %v219
  %v228 = vmul.f32 %v113, %v220
  %v229 = vmul.f32 %v114, %v221
  %v230 = vmul.f32 %v115, %v222
  %v231 = vmul.f32 %v116, %v223
  %v232 = vmul.f32 %v117, %v224
  %v233 = vmul.f32 %v118, %v225
  %s234 = scalar_lea.vmem %s0, 2
  %v235 = vld [vmem:[%s234] ss:$4 sm:$0xff]
  %v237 = vlaneseq
  %v238 = vshrl.u32 %v237, 7
  %v239 = vsub.s32 0, %v238
  %v240 = vrot.slane %v235, %v239
  %v241 = vlaneseq
  %v242 = vshrl.u32 %v241, 7
  %v243 = vsub.s32 1, %v242
  %v244 = vrot.slane %v235, %v243
  %v245 = vlaneseq
  %v246 = vshrl.u32 %v245, 7
  %v247 = vsub.s32 2, %v246
  %v248 = vrot.slane %v235, %v247
  %v249 = vlaneseq
  %v250 = vshrl.u32 %v249, 7
  %v251 = vsub.s32 3, %v250
  %v252 = vrot.slane %v235, %v251
  %v253 = vlaneseq
  %v254 = vshrl.u32 %v253, 7
  %v255 = vsub.s32 4, %v254
  %v256 = vrot.slane %v235, %v255
  %v257 = vlaneseq
  %v258 = vshrl.u32 %v257, 7
  %v259 = vsub.s32 5, %v258
  %v260 = vrot.slane %v235, %v259
  %v261 = vlaneseq
  %v262 = vshrl.u32 %v261, 7
  %v263 = vsub.s32 6, %v262
  %v264 = vrot.slane %v235, %v263
  %v265 = vlaneseq
  %v266 = vshrl.u32 %v265, 7
  %v267 = vsub.s32 7, %v266
  %v268 = vrot.slane %v235, %v267
  %277 = vset.pattern.permute.xlu0 8
  %278 = vperm.xlu0 %277, %v12
  %v279 = vpop.permute.xlu0 %278
  %v281 = vsub.f32 %v240, %v279
  %v282 = vsub.f32 %v244, %v279
  %v283 = vsub.f32 %v248, %v279
  %v284 = vsub.f32 %v252, %v279
  %v285 = vsub.f32 %v256, %v279
  %v286 = vsub.f32 %v260, %v279
  %v287 = vsub.f32 %v264, %v279
  %v288 = vsub.f32 %v268, %v279
  %289 = vset.pattern.permute.xlu0 10
  %290 = vperm.xlu0 %289, %v12
  %v291 = vpop.permute.xlu0 %290
  %v293 = vmul.f32 %v291, %v281
  %v294 = vmul.f32 %v291, %v282
  %v295 = vmul.f32 %v291, %v283
  %v296 = vmul.f32 %v291, %v284
  %v297 = vmul.f32 %v291, %v285
  %v298 = vmul.f32 %v291, %v286
  %v299 = vmul.f32 %v291, %v287
  %v300 = vmul.f32 %v291, %v288
  %301 = vset.pattern.permute.xlu0 9
  %302 = vperm.xlu0 %301, %v12
  %v303 = vpop.permute.xlu0 %302
  %v305 = vsub.f32 %v303, %v240
  %v306 = vsub.f32 %v303, %v244
  %v307 = vsub.f32 %v303, %v248
  %v308 = vsub.f32 %v303, %v252
  %v309 = vsub.f32 %v303, %v256
  %v310 = vsub.f32 %v303, %v260
  %v311 = vsub.f32 %v303, %v264
  %v312 = vsub.f32 %v303, %v268
  %313 = vset.pattern.permute.xlu0 11
  %314 = vperm.xlu0 %313, %v12
  %v315 = vpop.permute.xlu0 %314
  %v317 = vmul.f32 %v315, %v305
  %v318 = vmul.f32 %v315, %v306
  %v319 = vmul.f32 %v315, %v307
  %v320 = vmul.f32 %v315, %v308
  %v321 = vmul.f32 %v315, %v309
  %v322 = vmul.f32 %v315, %v310
  %v323 = vmul.f32 %v315, %v311
  %v324 = vmul.f32 %v315, %v312
  %v325 = vmin.f32 %v293, %v317
  %v326 = vmin.f32 %v294, %v318
  %v327 = vmin.f32 %v295, %v319
  %v328 = vmin.f32 %v296, %v320
  %v329 = vmin.f32 %v297, %v321
  %v330 = vmin.f32 %v298, %v322
  %v331 = vmin.f32 %v299, %v323
  %v332 = vmin.f32 %v300, %v324
  %v333 = vmax.f32 %v325, 0.0
  %v334 = vmax.f32 %v326, 0.0
  %v335 = vmax.f32 %v327, 0.0
  %v336 = vmax.f32 %v328, 0.0
  %v337 = vmax.f32 %v329, 0.0
  %v338 = vmax.f32 %v330, 0.0
  %v339 = vmax.f32 %v331, 0.0
  %v340 = vmax.f32 %v332, 0.0
  %v341 = vmul.f32 %v226, %v333
  %v342 = vmul.f32 %v227, %v334
  %v343 = vmul.f32 %v228, %v335
  %v344 = vmul.f32 %v229, %v336
  %v345 = vmul.f32 %v230, %v337
  %v346 = vmul.f32 %v231, %v338
  %v347 = vmul.f32 %v232, %v339
  %v348 = vmul.f32 %v233, %v340
  %s349 = scalar_lea.vmem %s0, 3
  %v350 = vld [vmem:[%s349] ss:$4 sm:$0xff]
  %v352 = vlaneseq
  %v353 = vshrl.u32 %v352, 7
  %v354 = vsub.s32 0, %v353
  %v355 = vrot.slane %v350, %v354
  %v356 = vlaneseq
  %v357 = vshrl.u32 %v356, 7
  %v358 = vsub.s32 1, %v357
  %v359 = vrot.slane %v350, %v358
  %v360 = vlaneseq
  %v361 = vshrl.u32 %v360, 7
  %v362 = vsub.s32 2, %v361
  %v363 = vrot.slane %v350, %v362
  %v364 = vlaneseq
  %v365 = vshrl.u32 %v364, 7
  %v366 = vsub.s32 3, %v365
  %v367 = vrot.slane %v350, %v366
  %v368 = vlaneseq
  %v369 = vshrl.u32 %v368, 7
  %v370 = vsub.s32 4, %v369
  %v371 = vrot.slane %v350, %v370
  %v372 = vlaneseq
  %v373 = vshrl.u32 %v372, 7
  %v374 = vsub.s32 5, %v373
  %v375 = vrot.slane %v350, %v374
  %v376 = vlaneseq
  %v377 = vshrl.u32 %v376, 7
  %v378 = vsub.s32 6, %v377
  %v379 = vrot.slane %v350, %v378
  %v380 = vlaneseq
  %v381 = vshrl.u32 %v380, 7
  %v382 = vsub.s32 7, %v381
  %v383 = vrot.slane %v350, %v382
  %392 = vset.pattern.permute.xlu0 12
  %393 = vperm.xlu0 %392, %v12
  %v394 = vpop.permute.xlu0 %393
  %v396 = vsub.f32 %v355, %v394
  %v397 = vsub.f32 %v359, %v394
  %v398 = vsub.f32 %v363, %v394
  %v399 = vsub.f32 %v367, %v394
  %v400 = vsub.f32 %v371, %v394
  %v401 = vsub.f32 %v375, %v394
  %v402 = vsub.f32 %v379, %v394
  %v403 = vsub.f32 %v383, %v394
  %404 = vset.pattern.permute.xlu0 14
  %405 = vperm.xlu0 %404, %v12
  %v406 = vpop.permute.xlu0 %405
  %v408 = vmul.f32 %v406, %v396
  %v409 = vmul.f32 %v406, %v397
  %v410 = vmul.f32 %v406, %v398
  %v411 = vmul.f32 %v406, %v399
  %v412 = vmul.f32 %v406, %v400
  %v413 = vmul.f32 %v406, %v401
  %v414 = vmul.f32 %v406, %v402
  %v415 = vmul.f32 %v406, %v403
  %416 = vset.pattern.permute.xlu0 13
  %417 = vperm.xlu0 %416, %v12
  %v418 = vpop.permute.xlu0 %417
  %v420 = vsub.f32 %v418, %v355
  %v421 = vsub.f32 %v418, %v359
  %v422 = vsub.f32 %v418, %v363
  %v423 = vsub.f32 %v418, %v367
  %v424 = vsub.f32 %v418, %v371
  %v425 = vsub.f32 %v418, %v375
  %v426 = vsub.f32 %v418, %v379
  %v427 = vsub.f32 %v418, %v383
  %428 = vset.pattern.permute.xlu0 15
  %429 = vperm.xlu0 %428, %v12
  %v430 = vpop.permute.xlu0 %429
  %v432 = vmul.f32 %v430, %v420
  %v433 = vmul.f32 %v430, %v421
  %v434 = vmul.f32 %v430, %v422
  %v435 = vmul.f32 %v430, %v423
  %v436 = vmul.f32 %v430, %v424
  %v437 = vmul.f32 %v430, %v425
  %v438 = vmul.f32 %v430, %v426
  %v439 = vmul.f32 %v430, %v427
  %v440 = vmin.f32 %v408, %v432
  %v441 = vmin.f32 %v409, %v433
  %v442 = vmin.f32 %v410, %v434
  %v443 = vmin.f32 %v411, %v435
  %v444 = vmin.f32 %v412, %v436
  %v445 = vmin.f32 %v413, %v437
  %v446 = vmin.f32 %v414, %v438
  %v447 = vmin.f32 %v415, %v439
  %v448 = vmax.f32 %v440, 0.0
  %v449 = vmax.f32 %v441, 0.0
  %v450 = vmax.f32 %v442, 0.0
  %v451 = vmax.f32 %v443, 0.0
  %v452 = vmax.f32 %v444, 0.0
  %v453 = vmax.f32 %v445, 0.0
  %v454 = vmax.f32 %v446, 0.0
  %v455 = vmax.f32 %v447, 0.0
  %v456 = vmul.f32 %v341, %v448
  %v457 = vmul.f32 %v342, %v449
  %v458 = vmul.f32 %v343, %v450
  %v459 = vmul.f32 %v344, %v451
  %v460 = vmul.f32 %v345, %v452
  %v461 = vmul.f32 %v346, %v453
  %v462 = vmul.f32 %v347, %v454
  %v463 = vmul.f32 %v348, %v455
  %464 = vst [vmem:[%s2] sm:$0xff] %v456
  %465 = vst [vmem:[%s2 + $0x8] sm:$0xff] %v457
  %466 = vst [vmem:[%s2 + $0x10] sm:$0xff] %v458
  %467 = vst [vmem:[%s2 + $0x18] sm:$0xff] %v459
  %468 = vst [vmem:[%s2 + $0x20] sm:$0xff] %v460
  %469 = vst [vmem:[%s2 + $0x28] sm:$0xff] %v461
  %470 = vst [vmem:[%s2 + $0x30] sm:$0xff] %v462
  %471 = vst [vmem:[%s2 + $0x38] sm:$0xff] %v463
  // Predicated region
  $region10: #{prodfks_forward.1} parent=0 // pred_check
    _
  $region11: #{prodfks_forward.1} parent=0 // pred_check_branch
    %473 = sbr.rel (0) target = $region13
  $region12: #{prodfks_forward.1} parent=0 // pred_region
    _
  $region13: #{prodfks_forward.1} parent=0 // pred_fallthru
    _
  // Predicated region
  $region14: #{prodfks_forward.1} parent=0 // pred_check
    _
  $region15: #{prodfks_forward.1} parent=0 // pred_check_branch
    %475 = sbr.rel (0) target = $region17
  $region16: #{prodfks_forward.1} parent=0 // pred_region
    _
  $region17: #{prodfks_forward.1} parent=0 // pred_fallthru
    _

</llo_original>
